<compile_context>
chip_gen: v6e
topology: v6e:2x2x1
jax: 0.10.0
libtpu: 0.0.40
codegen_flags: <defaults>
</compile_context>

<pallas_src>
import functools

import jax
import jax.numpy as jnp
from jax.experimental import pallas as pl
from jax.experimental.pallas import tpu as pltpu

_COS_EPS = 1e-8   # torch.nn.functional.cosine_similarity default eps
_LANE = 128
_SUBLANE = 8


def _round_up(x, m):
    return ((x + m - 1) // m) * m


def _choose_s_tile(batch, s_rows, itemsize):
    """Rows (of 128 lanes) per grid step: ~1 MiB per input block, capped."""
    target = max(_SUBLANE, (1 << 20) // max(1, batch * _LANE * itemsize))
    s_tile = max(_SUBLANE, (min(512, target) // _SUBLANE) * _SUBLANE)
    return min(s_tile, _round_up(s_rows, _SUBLANE))


def _mixloss_kernel(mask_ref, pred_ref, true_ref, out_ref, *,
                    inv_b, eps, compute_obs, compute_corr):
    """One tile: (B, S_TILE, 128) of pred/true + (2, S_TILE, 128) window masks.

    Emits a lane-dense (1, 8, 128) block of partial sums:
      lane 0: sum over forecast-window (c,t) of sqrt(mean_b (p-t)^2)
      lane 1: same over the observed window
      lane 2: sum over forecast-window (c,t) of (1 - cos_b(pred_c, true_c))
    """
    p = pred_ref[...].astype(jnp.float32)             # (B, S_TILE, 128)
    t = true_ref[...].astype(jnp.float32)
    m_fc = mask_ref[0]                                # (S_TILE, 128) f32
    m_obs = mask_ref[1]

    # Per-(c,t) RMSE over the batch axis (leading axis -> pure VPU adds).
    d = p - t
    rmse = jnp.sqrt(jnp.sum(d * d, axis=0) * inv_b)   # (S_TILE, 128)

    sum_fc = jnp.sum(m_fc * rmse)
    sum_obs = jnp.sum(m_obs * rmse) if compute_obs else jnp.float32(0.0)

    if compute_corr:
        # Center over batch, clamp each norm separately (matches current
        # torch.nn.functional.cosine_similarity).  Centered temporaries are
        # tile-sized only, and keep exact numerical parity with the reference.
        pc = p - jnp.sum(p, axis=0) * inv_b
        tc = t - jnp.sum(t, axis=0) * inv_b
        w12 = jnp.sum(pc * tc, axis=0)
        n1 = jnp.maximum(jnp.sqrt(jnp.sum(pc * pc, axis=0)), eps)
        n2 = jnp.maximum(jnp.sqrt(jnp.sum(tc * tc, axis=0)), eps)
        cos = w12 / (n1 * n2)
        sum_corr = jnp.sum(m_fc * (1.0 - cos))
    else:
        sum_corr = jnp.float32(0.0)

    # Lane-dense, unmasked (1, 8, 128) store of the three partial sums.
    lane = jax.lax.broadcasted_iota(jnp.int32, (1, _SUBLANE, _LANE), 2)
    vec = jnp.where(lane == 0, sum_fc, 0.0)
    vec = jnp.where(lane == 1, sum_obs, vec)
    vec = jnp.where(lane == 2, sum_corr, vec)
    out_ref[...] = vec.astype(jnp.float32)


def mix_loss(index_pred, index_true, *, lambda_1, lambda_2, lambda_3, obs_time):
    """Pallas implementation of MixLoss.forward; returns the scalar loss."""
    assert index_pred.shape == index_true.shape
    batch, chan, time = (int(x) for x in index_pred.shape)
    obs_time = int(obs_time)

    n = chan * time
    itemsize = jnp.dtype(index_pred.dtype).itemsize
    s_rows = pl.cdiv(n, _LANE)
    s_tile = _choose_s_tile(batch, s_rows, itemsize)
    s_pad = _round_up(s_rows, s_tile)
    n_pad = s_pad * _LANE
    num_tiles = s_pad // s_tile

    # Window / validity masks over the flattened-and-padded (C*T) axis.
    pos = jnp.arange(n_pad, dtype=jnp.int32)
    t_idx = pos % time
    valid = pos < n
    m_fc = (valid & (t_idx >= obs_time)).astype(jnp.float32)
    m_obs = (valid & (t_idx < obs_time)).astype(jnp.float32)
    masks = jnp.stack([m_fc, m_obs]).reshape(2, s_pad, _LANE)

    def to_tiles(x):
        x = x.reshape(batch, n)
        if n_pad != n:
            x = jnp.pad(x, ((0, 0), (0, n_pad - n)))
        return x.reshape(batch, s_pad, _LANE)

    pred3 = to_tiles(index_pred)
    true3 = to_tiles(index_true)

    kernel = functools.partial(
        _mixloss_kernel,
        inv_b=1.0 / batch,
        eps=float(_COS_EPS),
        compute_obs=(lambda_2 != 0),
        compute_corr=(lambda_3 != 0),
    )

    cost = pl.CostEstimate(
        flops=int((14 * batch + 12) * n_pad),
        transcendentals=int(3 * n_pad),
        bytes_accessed=int(2 * batch * n_pad * itemsize + 2 * n_pad * 4
                           + num_tiles * _SUBLANE * _LANE * 4),
    )

    parts = pl.pallas_call(
        kernel,
        out_shape=jax.ShapeDtypeStruct((num_tiles, _SUBLANE, _LANE), jnp.float32),
        grid=(num_tiles,),
        in_specs=[
            pl.BlockSpec((2, s_tile, _LANE), lambda i: (0, i, 0)),
            pl.BlockSpec((batch, s_tile, _LANE), lambda i: (0, i, 0)),
            pl.BlockSpec((batch, s_tile, _LANE), lambda i: (0, i, 0)),
        ],
        out_specs=pl.BlockSpec((1, _SUBLANE, _LANE), lambda i: (i, 0, 0)),
        compiler_params=pltpu.CompilerParams(
            dimension_semantics=("parallel",),
            vmem_limit_bytes=32 * 1024 * 1024,
        ),
        cost_estimate=cost,
    )(masks, pred3, true3)

    # Tiny cross-tile reduction + lambda weighting in plain JAX.
    sums = jnp.sum(parts[:, 0, :], axis=0)            # (128,)
    n_fc = chan * (time - obs_time)
    n_obs = chan * obs_time

    total = lambda_1 * sums[0] / n_fc
    if lambda_2 != 0:
        total = total + lambda_2 * sums[1] / n_obs
    if lambda_3 != 0:
        total = total + lambda_3 * sums[2] / n_fc
    return total


def _mix_loss_ref(index_pred, index_true, *, lambda_1, lambda_2, lambda_3,
                  obs_time):
    """Pure-JAX reference mirroring the PyTorch forward, for validation."""
    p = index_pred.astype(jnp.float32)
    t = index_true.astype(jnp.float32)

    def rmse(a, b):
        return jnp.mean(jnp.sqrt(jnp.mean((a - b) ** 2, axis=0)))

    pred, gtrue = p[:, :, obs_time:], t[:, :, obs_time:]
    total = rmse(pred, gtrue) * lambda_1
    if lambda_2 != 0:
        total = total + rmse(p[:, :, :obs_time], t[:, :, :obs_time]) * lambda_2
    if lambda_3 != 0:
        pc = pred - jnp.mean(pred, axis=0, keepdims=True)
        gc = gtrue - jnp.mean(gtrue, axis=0, keepdims=True)
        n1 = jnp.maximum(jnp.sqrt(jnp.sum(pc * pc, axis=0)), _COS_EPS)
        n2 = jnp.maximum(jnp.sqrt(jnp.sum(gc * gc, axis=0)), _COS_EPS)
        cos = jnp.sum(pc * gc, axis=0) / (n1 * n2)
        total = total + jnp.mean(1.0 - cos) * lambda_3
    return total


if __name__ == "__main__":
    # Deterministic "module parameters" (from __init__ signature).
    lambda_1, lambda_2, lambda_3 = 1.0, 0.5, 0.25
    obs_time = 8

    # Small inputs consistent with the forward: (batch, channels, time).
    B, C, T = 2, 4, 16
    key = jax.random.PRNGKey(0)
    k1, k2 = jax.random.split(key)
    index_pred = jax.random.normal(k1, (B, C, T), dtype=jnp.float32)
    index_true = jax.random.normal(k2, (B, C, T), dtype=jnp.float32)

    loss = mix_loss(index_pred, index_true,
                    lambda_1=lambda_1, lambda_2=lambda_2,
                    lambda_3=lambda_3, obs_time=obs_time)
    loss = jax.block_until_ready(loss)

    ref = _mix_loss_ref(index_pred, index_true,
                        lambda_1=lambda_1, lambda_2=lambda_2,
                        lambda_3=lambda_3, obs_time=obs_time)
    assert jnp.allclose(loss, ref, rtol=1e-5, atol=1e-5), (loss, ref)

    print("KERNEL_OK")
</pallas_src>

<mosaic_0001>
module attributes {stable_mosaic.version = 11 : i64} {
  func.func @_mixloss_kernel(%arg0: i32, %arg1: memref<2x8x128xf32, #tpu.memory_space<vmem>>, %arg2: memref<2x8x128xf32, #tpu.memory_space<vmem>>, %arg3: memref<2x8x128xf32, #tpu.memory_space<vmem>>, %arg4: memref<1x8x128xf32, #tpu.memory_space<vmem>>) attributes {dimension_semantics = [#tpu.dimension_semantics<parallel>], iteration_bounds = array<i64: 1>, scalar_prefetch = 0 : i64, scratch_operands = 0 : i64, tpu.core_type = #tpu.core_type<tc>, window_params = [{transform_indices = @transform_0, window_bounds = array<i64: 2, 8, 128>}, {transform_indices = @transform_1, window_bounds = array<i64: 2, 8, 128>}, {transform_indices = @transform_2, window_bounds = array<i64: 2, 8, 128>}, {transform_indices = @transform_3, window_bounds = array<i64: 1, 8, 128>}]} {
    %c0 = arith.constant 0 : index
    %c0_0 = arith.constant 0 : index
    %c0_1 = arith.constant 0 : index
    %0 = vector.load %arg2[%c0, %c0_0, %c0_1] : memref<2x8x128xf32, #tpu.memory_space<vmem>>, vector<2x8x128xf32>
    %c0_2 = arith.constant 0 : index
    %c0_3 = arith.constant 0 : index
    %c0_4 = arith.constant 0 : index
    %1 = vector.load %arg3[%c0_2, %c0_3, %c0_4] : memref<2x8x128xf32, #tpu.memory_space<vmem>>, vector<2x8x128xf32>
    %c0_5 = arith.constant 0 : index
    %c0_6 = arith.constant 0 : index
    %c0_7 = arith.constant 0 : index
    %2 = vector.load %arg1[%c0_5, %c0_6, %c0_7] : memref<2x8x128xf32, #tpu.memory_space<vmem>>, vector<1x8x128xf32>
    %3 = vector.shape_cast %2 : vector<1x8x128xf32> to vector<8x128xf32>
    %c1 = arith.constant 1 : index
    %c0_8 = arith.constant 0 : index
    %c0_9 = arith.constant 0 : index
    %4 = vector.load %arg1[%c1, %c0_8, %c0_9] : memref<2x8x128xf32, #tpu.memory_space<vmem>>, vector<1x8x128xf32>
    %5 = vector.shape_cast %4 : vector<1x8x128xf32> to vector<8x128xf32>
    %6 = arith.subf %0, %1 : vector<2x8x128xf32>
    %7 = arith.mulf %6, %6 : vector<2x8x128xf32>
    %cst = arith.constant dense<0.000000e+00> : vector<8x128xf32>
    %8 = vector.multi_reduction <add>, %7, %cst [0] : vector<2x8x128xf32> to vector<8x128xf32>
    %cst_10 = arith.constant 5.000000e-01 : f32
    %9 = vector.broadcast %cst_10 : f32 to vector<8x128xf32>
    %10 = arith.mulf %8, %9 : vector<8x128xf32>
    %11 = math.sqrt %10 : vector<8x128xf32>
    %12 = arith.mulf %3, %11 : vector<8x128xf32>
    %13 = vector.shape_cast %12 : vector<8x128xf32> to vector<1x8x128xf32>
    %cst_11 = arith.constant dense<0.000000e+00> : vector<1xf32>
    %14 = vector.multi_reduction <add>, %13, %cst_11 [1, 2] : vector<1x8x128xf32> to vector<1xf32>
    %15 = vector.shape_cast %14 : vector<1xf32> to vector<1x1x1xf32>
    %16 = vector.extract %15[0, 0, 0] : f32 from vector<1x1x1xf32>
    %17 = arith.mulf %5, %11 : vector<8x128xf32>
    %18 = vector.shape_cast %17 : vector<8x128xf32> to vector<1x8x128xf32>
    %cst_12 = arith.constant dense<0.000000e+00> : vector<1xf32>
    %19 = vector.multi_reduction <add>, %18, %cst_12 [1, 2] : vector<1x8x128xf32> to vector<1xf32>
    %20 = vector.shape_cast %19 : vector<1xf32> to vector<1x1x1xf32>
    %21 = vector.extract %20[0, 0, 0] : f32 from vector<1x1x1xf32>
    %cst_13 = arith.constant dense<0.000000e+00> : vector<8x128xf32>
    %22 = vector.multi_reduction <add>, %0, %cst_13 [0] : vector<2x8x128xf32> to vector<8x128xf32>
    %cst_14 = arith.constant 5.000000e-01 : f32
    %23 = vector.broadcast %cst_14 : f32 to vector<8x128xf32>
    %24 = arith.mulf %22, %23 : vector<8x128xf32>
    %25 = vector.shape_cast %24 : vector<8x128xf32> to vector<1x8x128xf32>
    %26 = vector.broadcast %25 : vector<1x8x128xf32> to vector<2x8x128xf32>
    %27 = arith.subf %0, %26 : vector<2x8x128xf32>
    %cst_15 = arith.constant dense<0.000000e+00> : vector<8x128xf32>
    %28 = vector.multi_reduction <add>, %1, %cst_15 [0] : vector<2x8x128xf32> to vector<8x128xf32>
    %cst_16 = arith.constant 5.000000e-01 : f32
    %29 = vector.broadcast %cst_16 : f32 to vector<8x128xf32>
    %30 = arith.mulf %28, %29 : vector<8x128xf32>
    %31 = vector.shape_cast %30 : vector<8x128xf32> to vector<1x8x128xf32>
    %32 = vector.broadcast %31 : vector<1x8x128xf32> to vector<2x8x128xf32>
    %33 = arith.subf %1, %32 : vector<2x8x128xf32>
    %34 = arith.mulf %27, %33 : vector<2x8x128xf32>
    %cst_17 = arith.constant dense<0.000000e+00> : vector<8x128xf32>
    %35 = vector.multi_reduction <add>, %34, %cst_17 [0] : vector<2x8x128xf32> to vector<8x128xf32>
    %36 = arith.mulf %27, %27 : vector<2x8x128xf32>
    %cst_18 = arith.constant dense<0.000000e+00> : vector<8x128xf32>
    %37 = vector.multi_reduction <add>, %36, %cst_18 [0] : vector<2x8x128xf32> to vector<8x128xf32>
    %38 = math.sqrt %37 : vector<8x128xf32>
    %cst_19 = arith.constant 9.99999993E-9 : f32
    %39 = vector.broadcast %cst_19 : f32 to vector<8x128xf32>
    %40 = arith.maximumf %38, %39 : vector<8x128xf32>
    %41 = arith.mulf %33, %33 : vector<2x8x128xf32>
    %cst_20 = arith.constant dense<0.000000e+00> : vector<8x128xf32>
    %42 = vector.multi_reduction <add>, %41, %cst_20 [0] : vector<2x8x128xf32> to vector<8x128xf32>
    %43 = math.sqrt %42 : vector<8x128xf32>
    %cst_21 = arith.constant 9.99999993E-9 : f32
    %44 = vector.broadcast %cst_21 : f32 to vector<8x128xf32>
    %45 = arith.maximumf %43, %44 : vector<8x128xf32>
    %46 = arith.mulf %40, %45 : vector<8x128xf32>
    %47 = arith.divf %35, %46 : vector<8x128xf32>
    %cst_22 = arith.constant 1.000000e+00 : f32
    %48 = vector.broadcast %cst_22 : f32 to vector<8x128xf32>
    %49 = arith.subf %48, %47 : vector<8x128xf32>
    %50 = arith.mulf %3, %49 : vector<8x128xf32>
    %51 = vector.shape_cast %50 : vector<8x128xf32> to vector<1x8x128xf32>
    %cst_23 = arith.constant dense<0.000000e+00> : vector<1xf32>
    %52 = vector.multi_reduction <add>, %51, %cst_23 [1, 2] : vector<1x8x128xf32> to vector<1xf32>
    %53 = vector.shape_cast %52 : vector<1xf32> to vector<1x1x1xf32>
    %54 = vector.extract %53[0, 0, 0] : f32 from vector<1x1x1xf32>
    %55 = tpu.iota {dimensions = array<i32: 2>} : vector<1x8x128xi32>
    %c0_i32 = arith.constant 0 : i32
    %56 = vector.broadcast %c0_i32 : i32 to vector<1x8x128xi32>
    %57 = arith.cmpi eq, %55, %56 : vector<1x8x128xi32>
    %cst_24 = arith.constant 0.000000e+00 : f32
    %58 = vector.broadcast %16 : f32 to vector<1x8x128xf32>
    %59 = vector.broadcast %cst_24 : f32 to vector<1x8x128xf32>
    %60 = arith.select %57, %58, %59 : vector<1x8x128xi1>, vector<1x8x128xf32>
    %c1_i32 = arith.constant 1 : i32
    %61 = vector.broadcast %c1_i32 : i32 to vector<1x8x128xi32>
    %62 = arith.cmpi eq, %55, %61 : vector<1x8x128xi32>
    %63 = vector.broadcast %21 : f32 to vector<1x8x128xf32>
    %64 = arith.select %62, %63, %60 : vector<1x8x128xi1>, vector<1x8x128xf32>
    %c2_i32 = arith.constant 2 : i32
    %65 = vector.broadcast %c2_i32 : i32 to vector<1x8x128xi32>
    %66 = arith.cmpi eq, %55, %65 : vector<1x8x128xi32>
    %67 = vector.broadcast %54 : f32 to vector<1x8x128xf32>
    %68 = arith.select %66, %67, %64 : vector<1x8x128xi1>, vector<1x8x128xf32>
    %c0_25 = arith.constant 0 : index
    %c0_26 = arith.constant 0 : index
    %c0_27 = arith.constant 0 : index
    %69 = vector.load %arg4[%c0_25, %c0_26, %c0_27] : memref<1x8x128xf32, #tpu.memory_space<vmem>>, vector<1x8x128xf32>
    tpu.vector_store %arg4[%c0_25, %c0_26, %c0_27], %68 {strides = array<i32>} : memref<1x8x128xf32, #tpu.memory_space<vmem>>, vector<1x8x128xf32>,
    return
  }
  func.func @transform_0(%arg0: i32) -> (i32, i32, i32) {
    %c0_i32 = arith.constant 0 : i32
    %c0_i32_0 = arith.constant 0 : i32
    %c0_i32_1 = arith.constant 0 : i32
    return %c0_i32, %arg0, %c0_i32_0 : i32, i32, i32
  }
  func.func @transform_1(%arg0: i32) -> (i32, i32, i32) {
    %c0_i32 = arith.constant 0 : i32
    %c0_i32_0 = arith.constant 0 : i32
    %c0_i32_1 = arith.constant 0 : i32
    return %c0_i32, %arg0, %c0_i32_0 : i32, i32, i32
  }
  func.func @transform_2(%arg0: i32) -> (i32, i32, i32) {
    %c0_i32 = arith.constant 0 : i32
    %c0_i32_0 = arith.constant 0 : i32
    %c0_i32_1 = arith.constant 0 : i32
    return %c0_i32, %arg0, %c0_i32_0 : i32, i32, i32
  }
  func.func @transform_3(%arg0: i32) -> (i32, i32, i32) {
    %c0_i32 = arith.constant 0 : i32
    %c0_i32_0 = arith.constant 0 : i32
    %c0_i32_1 = arith.constant 0 : i32
    return %arg0, %c0_i32, %c0_i32_0 : i32, i32, i32
  }
}

</mosaic_0001>

<llo_original>
// kernel: tpu_custom_call.1
$region0: #{tpu_custom_call.1}
  #allocation0 [shape = 'u32[]', space=smem, size = 0x4, offset = 0x4, fixed_abs, tag = 'smem constant byte address 0x4 - core index']
  #allocation1 [shape = 'u32[144,128]{1,0:T(1,128)}', space=vmem, size = 0x12000, scoped, tag = 'internal scratch']
  %s0 = inlined_call_operand.hbm [shape: f32[2,8,128], index: 0, kind: input, shape index: {}]
  %s1 = inlined_call_operand.hbm [shape: f32[2,8,128], index: 1, kind: input, shape index: {}]
  %s2 = inlined_call_operand.hbm [shape: f32[2,8,128], index: 2, kind: input, shape index: {}]
  %s3 = inlined_call_operand.hbm [shape: f32[1,8,128], index: 3, kind: output, shape index: {}]
  %s4 = sld [smem:[#allocation0]]
  $region34: #{tpu_custom_call.1} parent=0
    _
  %s6 = ssub.s32 1, %s4
  %s7 = scalar_select 0, %s6, %s4
  $region1: #{tpu_custom_call.1} parent=0
    #allocation2 [shape = 'u8[8192]{0}', space=vmem, size = 0x2000, scoped, tag = 'input window, operand 0, single buffered']
    #allocation3 [shape = 's32[1]{0}', space=sflag, size = 0x4, scoped, tag = 'scoped memory for tpu_custom_call.1']
    #allocation4 [shape = 's32[1]{0}', space=sflag, size = 0x4, scoped, tag = 'scoped memory for tpu_custom_call.1']
    #allocation5 [shape = 'u8[8192]{0}', space=vmem, size = 0x2000, scoped, tag = 'input window, operand 1, single buffered']
    #allocation6 [shape = 's32[1]{0}', space=sflag, size = 0x4, scoped, tag = 'scoped memory for tpu_custom_call.1']
    #allocation7 [shape = 'u8[8192]{0}', space=vmem, size = 0x2000, scoped, tag = 'input window, operand 2, single buffered']
    #allocation8 [shape = 'u8[4096]{0}', space=vmem, size = 0x1000, scoped, tag = 'output window, operand 0, single buffered']
    %8 = vsyncpa [#allocation3], 0
    %9 = vsyncpa [#allocation6], 0
    %10 = vsyncpa [#allocation4], 0
    // Predicated region
    $region2: #{tpu_custom_call.1} parent=1 // pred_check
      _
    $region3: #{tpu_custom_call.1} parent=1 // pred_check_branch
      %12 = sbr.rel (0) target = $region5
    $region4: #{tpu_custom_call.1} parent=1 // pred_region
      %s14 = ssub.s32 256, 256
      %15 = vsyncadd [#allocation3], %s14
      %s16 = sshll.u32 [#allocation2], 4
      %s17 = int_to_ptr.vmem [resolvable:$true] %s16
      %22 = dma.hbm_to_vmem [thread:$0]  %s0, 256, %s17, [#allocation3], 128, 128, 8
    $region5: #{tpu_custom_call.1} parent=1 // pred_fallthru
      _
    // Predicated region
    $region6: #{tpu_custom_call.1} parent=1 // pred_check
      _
    $region7: #{tpu_custom_call.1} parent=1 // pred_check_branch
      %24 = sbr.rel (0) target = $region9
    $region8: #{tpu_custom_call.1} parent=1 // pred_region
      %s26 = ssub.s32 256, 256
      %27 = vsyncadd [#allocation6], %s26
      %s28 = sshll.u32 [#allocation5], 4
      %s29 = int_to_ptr.vmem [resolvable:$true] %s28
      %34 = dma.hbm_to_vmem [thread:$0]  %s1, 256, %s29, [#allocation6], 128, 128, 8
    $region9: #{tpu_custom_call.1} parent=1 // pred_fallthru
      _
    // Predicated region
    $region10: #{tpu_custom_call.1} parent=1 // pred_check
      _
    $region11: #{tpu_custom_call.1} parent=1 // pred_check_branch
      %36 = sbr.rel (0) target = $region13
    $region12: #{tpu_custom_call.1} parent=1 // pred_region
      %s38 = ssub.s32 256, 256
      %39 = vsyncadd [#allocation6], %s38
      %s40 = sshll.u32 [#allocation7], 4
      %s41 = int_to_ptr.vmem [resolvable:$true] %s40
      %46 = dma.hbm_to_vmem [thread:$0]  %s2, 256, %s41, [#allocation6], 128, 128, 8
    $region13: #{tpu_custom_call.1} parent=1 // pred_fallthru
      _
    // Predicated region
    $region14: #{tpu_custom_call.1} parent=1 // pred_check
      _
    $region15: #{tpu_custom_call.1} parent=1 // pred_check_branch
      %48 = sbr.rel (0) target = $region17
    $region16: #{tpu_custom_call.1} parent=1 // pred_region
      %49 = dma.done [#allocation3], 256
    $region17: #{tpu_custom_call.1} parent=1 // pred_fallthru
      _
    // Predicated region
    $region18: #{tpu_custom_call.1} parent=1 // pred_check
      _
    $region19: #{tpu_custom_call.1} parent=1 // pred_check_branch
      %51 = sbr.rel (0) target = $region21
    $region20: #{tpu_custom_call.1} parent=1 // pred_region
      %52 = dma.done [#allocation6], 256
    $region21: #{tpu_custom_call.1} parent=1 // pred_fallthru
      _
    // Predicated region
    $region22: #{tpu_custom_call.1} parent=1 // pred_check
      _
    $region23: #{tpu_custom_call.1} parent=1 // pred_check_branch
      %54 = sbr.rel (0) target = $region25
    $region24: #{tpu_custom_call.1} parent=1 // pred_region
      %55 = dma.done [#allocation6], 256
    $region25: #{tpu_custom_call.1} parent=1 // pred_fallthru
      _
    %v56 = vld [vmem:[#allocation5] sm:$0xff]
    %v57 = vld [vmem:[#allocation5 + $0x8] sm:$0xff]
    %v58 = vld [vmem:[#allocation7] sm:$0xff]
    %v59 = vld [vmem:[#allocation7 + $0x8] sm:$0xff]
    %v60 = vld [vmem:[#allocation2] sm:$0xff]
    %s61 = scalar_lea.vmem [#allocation2], 8
    %v62 = vld [vmem:[%s61] sm:$0xff]
    %v63 = vsub.f32 %v56, %v58
    %v64 = vsub.f32 %v57, %v59
    %v65 = vmul.f32 %v63, %v63
    %v66 = vmul.f32 %v64, %v64
    %v67 = vadd.f32 %v65, %v66
    %v68 = vmul.f32 %v67, 0.5
    %v69 = vrsqrt.pop %v68
    %v70 = vmul.f32 %v68, %v69
    %vm71 = vcmp.eq.f32.partialorder %v68, inf
    %v72 = vsel %vm71, %v68, %v70
    %vm73 = vcmp.eq.f32.partialorder %v68, 0.0
    %v74 = vand.u32 %v68, 2147483648
    %v75 = vsel %vm73, %v74, %v72
    %v76 = vmul.f32 %v60, %v75
    %77 = vadd.xlane.f32.xlu0 %v76
    %v78 = vpop.xlane.xlu0 %77
    %v79 = vrot.slane %v78, 4
    %v80 = vadd.f32 %v78, %v79
    %v81 = vrot.slane %v80, 2
    %v82 = vadd.f32 %v80, %v81
    %v83 = vrot.slane %v82, 1
    %v84 = vadd.f32 %v82, %v83
    %s85 = vtos %v84
    %v86 = vmul.f32 %v62, %v75
    %87 = vadd.xlane.f32.xlu0 %v86
    %v88 = vpop.xlane.xlu0 %87
    %v89 = vrot.slane %v88, 4
    %v90 = vadd.f32 %v88, %v89
    %v91 = vrot.slane %v90, 2
    %v92 = vadd.f32 %v90, %v91
    %v93 = vrot.slane %v92, 1
    %v94 = vadd.f32 %v92, %v93
    %s95 = vtos %v94
    %v96 = vadd.f32 %v56, %v57
    %v97 = vmul.f32 %v96, 0.5
    %v98 = vsub.f32 %v56, %v97
    %v99 = vsub.f32 %v57, %v97
    %v100 = vadd.f32 %v58, %v59
    %v101 = vmul.f32 %v100, 0.5
    %v102 = vsub.f32 %v58, %v101
    %v103 = vsub.f32 %v59, %v101
    %v104 = vmul.f32 %v98, %v102
    %v105 = vmul.f32 %v99, %v103
    %v106 = vadd.f32 %v104, %v105
    %v107 = vmul.f32 %v98, %v98
    %v108 = vmul.f32 %v99, %v99
    %v109 = vadd.f32 %v107, %v108
    %v110 = vrsqrt.pop %v109
    %v111 = vmul.f32 %v109, %v110
    %vm112 = vcmp.eq.f32.partialorder %v109, inf
    %v113 = vsel %vm112, %v109, %v111
    %vm114 = vcmp.eq.f32.partialorder %v109, 0.0
    %v115 = vand.u32 %v109, 2147483648
    %v116 = vsel %vm114, %v115, %v113
    %v117 = vmax.f32 %v116, 1e-08
    %v118 = vmul.f32 %v102, %v102
    %v119 = vmul.f32 %v103, %v103
    %v120 = vadd.f32 %v118, %v119
    %v121 = vrsqrt.pop %v120
    %v122 = vmul.f32 %v120, %v121
    %vm123 = vcmp.eq.f32.partialorder %v120, inf
    %v124 = vsel %vm123, %v120, %v122
    %vm125 = vcmp.eq.f32.partialorder %v120, 0.0
    %v126 = vand.u32 %v120, 2147483648
    %v127 = vsel %vm125, %v126, %v124
    %v128 = vmax.f32 %v127, 1e-08
    %v129 = vmul.f32 %v117, %v128
    %v130 = vrcp.pop %v129
    %v131 = vmul.f32 %v106, %v130
    %v132 = vsub.f32 1.0, %v131
    %v133 = vmul.f32 %v60, %v132
    %134 = vadd.xlane.f32.xlu0 %v133
    %v135 = vpop.xlane.xlu0 %134
    %v136 = vrot.slane %v135, 4
    %v137 = vadd.f32 %v135, %v136
    %v138 = vrot.slane %v137, 2
    %v139 = vadd.f32 %v137, %v138
    %v140 = vrot.slane %v139, 1
    %v141 = vadd.f32 %v139, %v140
    %s142 = vtos %v141
    %v143 = vlaneseq
    %v144 = vand.u32 %v143, 127
    %vm145 = vcmp.eq.s32.totalorder %v144, 0
    %v146 = vstv %s85
    %v147 = vsel %vm145, %v146, 0.0
    %vm148 = vcmp.eq.s32.totalorder %v144, 1
    %v149 = vstv %s95
    %v150 = vsel %vm148, %v149, %v147
    %vm151 = vcmp.eq.s32.totalorder %v144, 2
    %v152 = vstv %s142
    %v153 = vsel %vm151, %v152, %v150
    %154 = vst [vmem:[#allocation8] sm:$0xff] %v153
    // Predicated region
    $region26: #{tpu_custom_call.1} parent=1 // pred_check
      _
    $region27: #{tpu_custom_call.1} parent=1 // pred_check_branch
      %156 = sbr.rel (0) target = $region29
    $region28: #{tpu_custom_call.1} parent=1 // pred_region
      %s158 = ssub.s32 128, 128
      %159 = vsyncadd [#allocation4], %s158
      %s161 = sshll.u32 [#allocation8], 4
      %s162 = int_to_ptr.vmem [resolvable:$true] %s161
      %164 = dma.vmem_to_hbm [thread:$0]  %s162, 128, %s3, [#allocation4]
    $region29: #{tpu_custom_call.1} parent=1 // pred_fallthru
      _
    // Predicated region
    $region30: #{tpu_custom_call.1} parent=1 // pred_check
      _
    $region31: #{tpu_custom_call.1} parent=1 // pred_check_branch
      %166 = sbr.rel (0) target = $region33
    $region32: #{tpu_custom_call.1} parent=1 // pred_region
      %167 = dma.done [#allocation4], 128
    $region33: #{tpu_custom_call.1} parent=1 // pred_fallthru
      _
    %168 = vsyncpa [#allocation3], 1
    %169 = vsyncpa [#allocation6], 1
    %170 = vsyncpa [#allocation4], 1

</llo_original>
